<compile_context>
chip_gen: v6e
topology: v6e:2x2x1
jax: 0.10.0
libtpu: 0.0.40
codegen_flags: <defaults>
</compile_context>

<pallas_src>
import jax
import jax.numpy as jnp
from jax.experimental import pallas as pl
from jax.experimental.pallas import tpu as pltpu


LANE = 128


def _round_up(x, m):
    return ((x + m - 1) // m) * m


def _mlp_a_kernel(x_ref, w1_ref, b1_ref, w2_ref, b2_ref, out_ref):
    # bn1 -> do1(identity) -> fc1 -> bn2 folded into (w1', b1').
    x = x_ref[...]
    h = jnp.dot(x, w1_ref[...], preferred_element_type=jnp.float32) + b1_ref[...]

    # ac1: LeakyReLU (negative_slope = 0.01): mul + max (no compare/select).
    a = jnp.maximum(h, jnp.float32(0.01) * h)

    # do2: identity (eval) -> fc2, computed in the 128-lane-padded domain.
    out = jnp.dot(a, w2_ref[...], preferred_element_type=jnp.float32) + b2_ref[...]

    # Store only the real output columns (narrow, contiguous HBM write).
    out_dim = out_ref.shape[-1]
    out_ref[...] = out[:, :out_dim].astype(out_ref.dtype)


def _resident_spec(shape):
    """Constant-index_map BlockSpec for VMEM-resident weights/biases.

    Requests a single buffer (never re-fetched); falls back cleanly if this
    jax version does not support pipeline_mode / pl.Buffered.
    """
    idx = lambda i: (0,) * len(shape)
    try:
        return pl.BlockSpec(shape, idx, pipeline_mode=pl.Buffered(1))
    except Exception:  # pragma: no cover - older jax without pipeline_mode
        return pl.BlockSpec(shape, idx)


def _choose_tile_n(n, in_size, f_pad, o_pad, out_dim,
                   *, max_tile_n=4096, vmem_budget=24 * 1024 * 1024):
    """Row-tile size from a conservative cross-generation VMEM budget."""
    # Resident weights/biases (count twice in case single-buffering fell back).
    weight_bytes = 4 * (in_size * f_pad + f_pad + f_pad * o_pad + o_pad)
    # Per row of an x tile: double-buffered x, double-buffered narrow output,
    # plus single-buffered f32 intermediates (hidden + padded fc2 output).
    per_row = 4 * (2 * in_size + 2 * out_dim + f_pad + o_pad)
    avail = vmem_budget - 2 * weight_bytes - (1 << 20)  # 1 MiB slack
    cap = max(avail // per_row, 8)

    tile = min(max_tile_n, cap)
    # Aim for >= ~8 grid steps on large batches (pipelining + megacore) but
    # never below 512 rows (>= ~85% of HBM roofline per measured data) ...
    tile = min(tile, max(512, _round_up(pl.cdiv(n, 8), 8)))
    # ... and never more rows than the batch actually has (8-sublane granule).
    tile = min(tile, _round_up(n, 8))
    return max(8, (tile // 8) * 8)


def mlp_a_forward(x, params):
    """Fused _MLP_A forward (eval mode) via one pallas_call.

    x: (N, in_size) float32 or bfloat16
    params: dict with bn1/bn2 (gamma, beta, mean, var) and fc1/fc2 (W, b).
    Returns: (N, 2) float32.
    """
    eps = 1e-5

    # Fold BatchNorm (eval) into per-feature scale/shift.
    s1 = params["bn1_gamma"] / jnp.sqrt(params["bn1_var"] + eps)
    t1 = params["bn1_beta"] - params["bn1_mean"] * s1
    s2 = params["bn2_gamma"] / jnp.sqrt(params["bn2_var"] + eps)
    t2 = params["bn2_beta"] - params["bn2_mean"] * s2

    # PyTorch Linear stores (out, in) -> transpose to (in, out).
    w1 = params["fc1_w"].T.astype(jnp.float32)     # (in_size, fil_num)
    b1 = params["fc1_b"].astype(jnp.float32)       # (fil_num,)
    w2 = params["fc2_w"].T.astype(jnp.float32)     # (fil_num, 2)
    b2 = params["fc2_b"].astype(jnp.float32)       # (2,)

    # Fold bn1 (input side) and bn2 (output side) into fc1:
    #   bn2(fc1(bn1(x))) = x @ (s1[:,None]*W1*s2[None,:]) + ((t1@W1 + b1)*s2 + t2)
    w1f = (s1[:, None] * w1) * s2[None, :]
    b1f = (t1 @ w1 + b1) * s2 + t2

    n, in_size = x.shape
    fil_num = w1.shape[1]
    out_dim = w2.shape[1]

    # Pad the small hidden / fc2 dims to 128 lanes so the matmuls and the
    # in-kernel elementwise ops are lane-dense.  (Weights are tiny; only the
    # real 2 output columns ever reach HBM.)
    f_pad = _round_up(fil_num, LANE)
    o_pad = _round_up(out_dim, LANE)

    # Keep x's dtype (bf16 or f32) and match W1' to it; everything downstream
    # accumulates in f32 via preferred_element_type.
    if x.dtype == jnp.bfloat16:
        compute_dtype = jnp.bfloat16
    else:
        compute_dtype = jnp.float32
        if x.dtype != jnp.float32:
            x = x.astype(jnp.float32)

    w1p = jnp.zeros((in_size, f_pad), compute_dtype).at[:, :fil_num].set(
        w1f.astype(compute_dtype))
    b1p = jnp.zeros((1, f_pad), jnp.float32).at[:, :fil_num].set(b1f)
    w2p = jnp.zeros((f_pad, o_pad), jnp.float32).at[:fil_num, :out_dim].set(w2)
    b2p = jnp.zeros((1, o_pad), jnp.float32).at[:, :out_dim].set(b2)

    tile_n = _choose_tile_n(n, in_size, f_pad, o_pad, out_dim)
    grid = (pl.cdiv(n, tile_n),)   # ragged tail handled by Pallas block clipping

    out = pl.pallas_call(
        _mlp_a_kernel,
        out_shape=jax.ShapeDtypeStruct((n, out_dim), jnp.float32),
        grid_spec=pl.GridSpec(
            grid=grid,
            in_specs=[
                pl.BlockSpec((tile_n, in_size), lambda i: (i, 0)),   # x tile
                _resident_spec((in_size, f_pad)),                    # W1'
                _resident_spec((1, f_pad)),                          # b1'
                _resident_spec((f_pad, o_pad)),                      # W2
                _resident_spec((1, o_pad)),                          # b2
            ],
            out_specs=pl.BlockSpec((tile_n, out_dim), lambda i: (i, 0)),
        ),
        compiler_params=pltpu.CompilerParams(
            dimension_semantics=("parallel",),
            vmem_limit_bytes=32 * 1024 * 1024,
        ),
    )(x, w1p, b1p, w2p, b2p)

    return out


def init_params(key, in_size, fil_num):
    """Deterministic synthetic parameters with PyTorch-like init shapes."""
    keys = jax.random.split(key, 8)
    bound1 = 1.0 / jnp.sqrt(in_size)
    bound2 = 1.0 / jnp.sqrt(fil_num)
    return {
        # BatchNorm1d(in_size): nontrivial running stats so folding is exercised.
        "bn1_gamma": jnp.ones((in_size,), jnp.float32),
        "bn1_beta": jnp.zeros((in_size,), jnp.float32),
        "bn1_mean": 0.1 * jax.random.normal(keys[4], (in_size,), jnp.float32),
        "bn1_var": jnp.ones((in_size,), jnp.float32)
                   + 0.05 * jax.random.uniform(keys[5], (in_size,), jnp.float32),
        # Linear(in_size, fil_num): weight (out, in), bias (out,)
        "fc1_w": jax.random.uniform(keys[0], (fil_num, in_size), jnp.float32,
                                    -bound1, bound1),
        "fc1_b": jax.random.uniform(keys[1], (fil_num,), jnp.float32,
                                    -bound1, bound1),
        # BatchNorm1d(fil_num): nontrivial running stats too.
        "bn2_gamma": jnp.ones((fil_num,), jnp.float32),
        "bn2_beta": jnp.zeros((fil_num,), jnp.float32),
        "bn2_mean": 0.05 * jax.random.normal(keys[6], (fil_num,), jnp.float32),
        "bn2_var": jnp.ones((fil_num,), jnp.float32)
                   + 0.05 * jax.random.uniform(keys[7], (fil_num,), jnp.float32),
        # Linear(fil_num, 2)
        "fc2_w": jax.random.uniform(keys[2], (2, fil_num), jnp.float32,
                                    -bound2, bound2),
        "fc2_b": jax.random.uniform(keys[3], (2,), jnp.float32, -bound2, bound2),
    }


def _reference(x, params):
    """Pure-JAX reference of the same (eval-mode) forward (full-f32 matmuls)."""
    eps = 1e-5
    hp = jax.lax.Precision.HIGHEST
    s1 = params["bn1_gamma"] / jnp.sqrt(params["bn1_var"] + eps)
    t1 = params["bn1_beta"] - params["bn1_mean"] * s1
    s2 = params["bn2_gamma"] / jnp.sqrt(params["bn2_var"] + eps)
    t2 = params["bn2_beta"] - params["bn2_mean"] * s2
    xb = x.astype(jnp.float32) * s1 + t1
    h = jnp.matmul(xb, params["fc1_w"].T, precision=hp) + params["fc1_b"]
    hb = h * s2 + t2
    a = jnp.where(hb >= 0, hb, 0.01 * hb)
    return jnp.matmul(a, params["fc2_w"].T, precision=hp) + params["fc2_b"]


if __name__ == "__main__":
    key = jax.random.PRNGKey(0)
    k_x1, k_p1, k_x2, k_p2 = jax.random.split(key, 4)

    # Case 1: tiny batch (single small tile).
    batch1, in_size1, fil_num1 = 8, 32, 16
    x1 = jax.random.normal(k_x1, (batch1, in_size1), jnp.float32)
    params1 = init_params(k_p1, in_size1, fil_num1)
    out1 = jax.block_until_ready(mlp_a_forward(x1, params1))
    ref1 = _reference(x1, params1)
    assert out1.shape == (batch1, 2)
    assert jnp.allclose(out1, ref1, atol=1e-3, rtol=1e-3), "case1 mismatch"

    # Case 2: multi-tile grid with a ragged tail (n % tile_n != 0).
    batch2, in_size2, fil_num2 = 1537, 64, 100
    x2 = jax.random.normal(k_x2, (batch2, in_size2), jnp.float32)
    params2 = init_params(k_p2, in_size2, fil_num2)
    out2 = jax.block_until_ready(mlp_a_forward(x2, params2))
    ref2 = _reference(x2, params2)
    assert out2.shape == (batch2, 2)
    assert jnp.allclose(out2, ref2, atol=1e-3, rtol=1e-3), "case2 mismatch"

    print("KERNEL_OK")
</pallas_src>

<mosaic_0001>
module attributes {stable_mosaic.version = 11 : i64} {
  func.func @_mlp_a_kernel(%arg0: i32, %arg1: memref<8x32xf32, #tpu.memory_space<vmem>>, %arg2: memref<32x128xf32, #tpu.memory_space<vmem>>, %arg3: memref<1x128xf32, #tpu.memory_space<vmem>>, %arg4: memref<128x128xf32, #tpu.memory_space<vmem>>, %arg5: memref<1x128xf32, #tpu.memory_space<vmem>>, %arg6: memref<8x2xf32, #tpu.memory_space<vmem>>) attributes {dimension_semantics = [#tpu.dimension_semantics<parallel>], iteration_bounds = array<i64: 1>, scalar_prefetch = 0 : i64, scratch_operands = 0 : i64, tpu.core_type = #tpu.core_type<tc>, window_params = [{transform_indices = @transform_0, window_bounds = array<i64: 8, 32>}, {pipeline_mode = #tpu.pipeline_mode<synchronous>, transform_indices = @transform_1, window_bounds = array<i64: 32, 128>}, {pipeline_mode = #tpu.pipeline_mode<synchronous>, transform_indices = @transform_2, window_bounds = array<i64: 1, 128>}, {pipeline_mode = #tpu.pipeline_mode<synchronous>, transform_indices = @transform_3, window_bounds = array<i64: 128, 128>}, {pipeline_mode = #tpu.pipeline_mode<synchronous>, transform_indices = @transform_4, window_bounds = array<i64: 1, 128>}, {transform_indices = @transform_5, window_bounds = array<i64: 8, 2>}]} {
    %c0 = arith.constant 0 : index
    %c0_0 = arith.constant 0 : index
    %0 = vector.load %arg1[%c0, %c0_0] : memref<8x32xf32, #tpu.memory_space<vmem>>, vector<8x32xf32>
    %c0_1 = arith.constant 0 : index
    %c0_2 = arith.constant 0 : index
    %1 = vector.load %arg2[%c0_1, %c0_2] : memref<32x128xf32, #tpu.memory_space<vmem>>, vector<32x128xf32>
    %cst = arith.constant dense<0.000000e+00> : vector<8x128xf32>
    %2 = tpu.matmul %0, %1, %cst {dimension_numbers = #tpu.dot_dimension_numbers<[1], [0], [0], [1], [0, 0, 1, 1], [], []>} : vector<8x32xf32>, vector<32x128xf32>, vector<8x128xf32> -> vector<8x128xf32>
    %c0_3 = arith.constant 0 : index
    %c0_4 = arith.constant 0 : index
    %3 = vector.load %arg3[%c0_3, %c0_4] : memref<1x128xf32, #tpu.memory_space<vmem>>, vector<1x128xf32>
    %4 = vector.broadcast %3 : vector<1x128xf32> to vector<8x128xf32>
    %5 = arith.addf %2, %4 : vector<8x128xf32>
    %cst_5 = arith.constant 0.00999999977 : f32
    %6 = vector.broadcast %cst_5 : f32 to vector<8x128xf32>
    %7 = arith.mulf %6, %5 : vector<8x128xf32>
    %8 = arith.maximumf %5, %7 : vector<8x128xf32>
    %c0_6 = arith.constant 0 : index
    %c0_7 = arith.constant 0 : index
    %9 = vector.load %arg4[%c0_6, %c0_7] : memref<128x128xf32, #tpu.memory_space<vmem>>, vector<128x128xf32>
    %cst_8 = arith.constant dense<0.000000e+00> : vector<8x128xf32>
    %10 = tpu.matmul %8, %9, %cst_8 {dimension_numbers = #tpu.dot_dimension_numbers<[1], [0], [0], [1], [0, 0, 1, 1], [], []>} : vector<8x128xf32>, vector<128x128xf32>, vector<8x128xf32> -> vector<8x128xf32>
    %c0_9 = arith.constant 0 : index
    %c0_10 = arith.constant 0 : index
    %11 = vector.load %arg5[%c0_9, %c0_10] : memref<1x128xf32, #tpu.memory_space<vmem>>, vector<1x128xf32>
    %12 = vector.broadcast %11 : vector<1x128xf32> to vector<8x128xf32>
    %13 = arith.addf %10, %12 : vector<8x128xf32>
    %14 = vector.extract_strided_slice %13 {offsets = [0, 0], sizes = [8, 2], strides = [1, 1]} : vector<8x128xf32> to vector<8x2xf32>
    %c0_11 = arith.constant 0 : index
    %c0_12 = arith.constant 0 : index
    %15 = vector.load %arg6[%c0_11, %c0_12] : memref<8x2xf32, #tpu.memory_space<vmem>>, vector<8x2xf32>
    tpu.vector_store %arg6[%c0_11, %c0_12], %14 {strides = array<i32>} : memref<8x2xf32, #tpu.memory_space<vmem>>, vector<8x2xf32>,
    return
  }
  func.func @transform_0(%arg0: i32) -> (i32, i32) {
    %c0_i32 = arith.constant 0 : i32
    %c0_i32_0 = arith.constant 0 : i32
    return %arg0, %c0_i32 : i32, i32
  }
  func.func @transform_1(%arg0: i32) -> (i32, i32) {
    %c0_i32 = arith.constant 0 : i32
    %c0_i32_0 = arith.constant 0 : i32
    %c0_i32_1 = arith.constant 0 : i32
    return %c0_i32, %c0_i32_0 : i32, i32
  }
  func.func @transform_2(%arg0: i32) -> (i32, i32) {
    %c0_i32 = arith.constant 0 : i32
    %c0_i32_0 = arith.constant 0 : i32
    %c0_i32_1 = arith.constant 0 : i32
    return %c0_i32, %c0_i32_0 : i32, i32
  }
  func.func @transform_3(%arg0: i32) -> (i32, i32) {
    %c0_i32 = arith.constant 0 : i32
    %c0_i32_0 = arith.constant 0 : i32
    %c0_i32_1 = arith.constant 0 : i32
    return %c0_i32, %c0_i32_0 : i32, i32
  }
  func.func @transform_4(%arg0: i32) -> (i32, i32) {
    %c0_i32 = arith.constant 0 : i32
    %c0_i32_0 = arith.constant 0 : i32
    %c0_i32_1 = arith.constant 0 : i32
    return %c0_i32, %c0_i32_0 : i32, i32
  }
  func.func @transform_5(%arg0: i32) -> (i32, i32) {
    %c0_i32 = arith.constant 0 : i32
    %c0_i32_0 = arith.constant 0 : i32
    return %arg0, %c0_i32 : i32, i32
  }
}

</mosaic_0001>

<llo_original>
// kernel: tpu_custom_call.1
$region0: #{tpu_custom_call.1}
  #allocation0 [shape = 'u32[]', space=smem, size = 0x4, offset = 0x4, fixed_abs, tag = 'smem constant byte address 0x4 - core index']
  #allocation1 [shape = 'u32[144,128]{1,0:T(1,128)}', space=vmem, size = 0x12000, scoped, tag = 'internal scratch']
  %s0 = inlined_call_operand.hbm [shape: f32[8,32], index: 0, kind: input, shape index: {}]
  %s1 = inlined_call_operand.hbm [shape: f32[32,128], index: 1, kind: input, shape index: {}]
  %s2 = inlined_call_operand.vmem [shape: f32[1,128], index: 2, kind: input, shape index: {}]
  %s3 = inlined_call_operand.hbm [shape: f32[128,128], index: 3, kind: input, shape index: {}]
  %s4 = inlined_call_operand.vmem [shape: f32[1,128], index: 4, kind: input, shape index: {}]
  %s5 = inlined_call_operand.vmem [shape: f32[8,2], index: 5, kind: output, shape index: {}]
  %s6 = sld [smem:[#allocation0]]
  $region42: #{tpu_custom_call.1} parent=0
    _
  %s8 = ssub.s32 1, %s6
  %s9 = scalar_select 0, %s8, %s6
  $region1: #{tpu_custom_call.1} parent=0
    #allocation2 [shape = 'u8[4096]{0}', space=vmem, size = 0x1000, scoped, tag = 'input window, operand 0, single buffered']
    #allocation3 [shape = 's32[1]{0}', space=sflag, size = 0x4, scoped, tag = 'scoped memory for tpu_custom_call.1']
    #allocation4 [shape = 'u8[16384]{0}', space=vmem, size = 0x4000, scoped, tag = 'input window, operand 1, single buffered']
    #allocation5 [shape = 's32[1]{0}', space=sflag, size = 0x4, scoped, tag = 'scoped memory for tpu_custom_call.1']
    #allocation6 [shape = 'u8[65536]{0}', space=vmem, size = 0x10000, scoped, tag = 'input window, operand 3, single buffered']
    %10 = vsyncpa [#allocation3], 0
    %11 = vsyncpa [#allocation5], 0
    // Predicated region
    $region2: #{tpu_custom_call.1} parent=1 // pred_check
      _
    $region3: #{tpu_custom_call.1} parent=1 // pred_check_branch
      %13 = sbr.rel (0) target = $region5
    $region4: #{tpu_custom_call.1} parent=1 // pred_region
      %s15 = ssub.s32 128, 128
      %16 = vsyncadd [#allocation3], %s15
      %s18 = sshll.u32 [#allocation2], 4
      %s19 = int_to_ptr.vmem [resolvable:$true] %s18
      %21 = dma.hbm_to_vmem [thread:$0]  %s0, 128, %s19, [#allocation3]
    $region5: #{tpu_custom_call.1} parent=1 // pred_fallthru
      _
    // Predicated region
    $region6: #{tpu_custom_call.1} parent=1 // pred_check
      _
    $region7: #{tpu_custom_call.1} parent=1 // pred_check_branch
      %23 = sbr.rel (0) target = $region9
    $region8: #{tpu_custom_call.1} parent=1 // pred_region
      %s25 = ssub.s32 512, 512
      %26 = vsyncadd [#allocation5], %s25
      %s27 = sshll.u32 [#allocation4], 4
      %s28 = int_to_ptr.vmem [resolvable:$true] %s27
      %33 = dma.hbm_to_vmem [thread:$0]  %s1, 512, %s28, [#allocation5], 128, 128, 8
    $region9: #{tpu_custom_call.1} parent=1 // pred_fallthru
      _
    // Predicated region
    $region10: #{tpu_custom_call.1} parent=1 // pred_check
      _
    $region11: #{tpu_custom_call.1} parent=1 // pred_check_branch
      %35 = sbr.rel (0) target = $region13
    $region12: #{tpu_custom_call.1} parent=1 // pred_region
      _
    $region13: #{tpu_custom_call.1} parent=1 // pred_fallthru
      _
    // Predicated region
    $region14: #{tpu_custom_call.1} parent=1 // pred_check
      _
    $region15: #{tpu_custom_call.1} parent=1 // pred_check_branch
      %37 = sbr.rel (0) target = $region17
    $region16: #{tpu_custom_call.1} parent=1 // pred_region
      %s39 = ssub.s32 2048, 2048
      %40 = vsyncadd [#allocation5], %s39
      %s41 = sshll.u32 [#allocation6], 4
      %s42 = int_to_ptr.vmem [resolvable:$true] %s41
      %47 = dma.hbm_to_vmem [thread:$0]  %s3, 2048, %s42, [#allocation5], 128, 128, 8
    $region17: #{tpu_custom_call.1} parent=1 // pred_fallthru
      _
    // Predicated region
    $region18: #{tpu_custom_call.1} parent=1 // pred_check
      _
    $region19: #{tpu_custom_call.1} parent=1 // pred_check_branch
      %49 = sbr.rel (0) target = $region21
    $region20: #{tpu_custom_call.1} parent=1 // pred_region
      _
    $region21: #{tpu_custom_call.1} parent=1 // pred_fallthru
      _
    // Predicated region
    $region22: #{tpu_custom_call.1} parent=1 // pred_check
      _
    $region23: #{tpu_custom_call.1} parent=1 // pred_check_branch
      %51 = sbr.rel (0) target = $region25
    $region24: #{tpu_custom_call.1} parent=1 // pred_region
      %52 = dma.done [#allocation3], 128
    $region25: #{tpu_custom_call.1} parent=1 // pred_fallthru
      _
    // Predicated region
    $region26: #{tpu_custom_call.1} parent=1 // pred_check
      _
    $region27: #{tpu_custom_call.1} parent=1 // pred_check_branch
      %54 = sbr.rel (0) target = $region29
    $region28: #{tpu_custom_call.1} parent=1 // pred_region
      %55 = dma.done [#allocation5], 512
    $region29: #{tpu_custom_call.1} parent=1 // pred_fallthru
      _
    // Predicated region
    $region30: #{tpu_custom_call.1} parent=1 // pred_check
      _
    $region31: #{tpu_custom_call.1} parent=1 // pred_check_branch
      %57 = sbr.rel (0) target = $region33
    $region32: #{tpu_custom_call.1} parent=1 // pred_region
      %58 = dma.done [#allocation5], 2048
    $region33: #{tpu_custom_call.1} parent=1 // pred_fallthru
      _
    %v59 = vld [vmem:[#allocation2] sm:$0xff]
    %v60 = vld [vmem:[#allocation4] sm:$0xff]
    %v61 = vld [vmem:[#allocation4 + $0x8] sm:$0xff]
    %v62 = vld [vmem:[#allocation4 + $0x10] sm:$0xff]
    %v63 = vld [vmem:[#allocation4 + $0x18] sm:$0xff]
    %v64 = vld [vmem:[%s2] sm:$0x1]
    %v66 = vlaneseq
    %v67 = vshrl.u32 %v66, 7
    %v68 = vsub.s32 0, %v67
    %v69 = vrot.slane %v64, %v68
    %vm71 = vcmask 261120
    %v73 = vsel %vm71, %v59, 0
    %75 = vmatprep.subr.mxu0 0.0
    %76 = vmatpush1.msra.mxu0 0.0
    %77 = vmatprep.subr.mxu0 0.0
    %78 = vmatpush1.msra.mxu0 0.0
    %79 = vmatprep.subr.mxu0 0.0
    %80 = vmatpush1.msra.mxu0 0.0
    %81 = vmatprep.subr.mxu0 0.0
    %82 = vmatpush1.msra.mxu0 0.0
    %83 = vmatprep.subr.mxu0 0.0
    %84 = vmatpush1.msra.mxu0 0.0
    %85 = vmatprep.subr.mxu0 0.0
    %86 = vmatpush1.msra.mxu0 0.0
    %87 = vmatprep.subr.mxu0 0.0
    %88 = vmatpush1.msra.mxu0 0.0
    %89 = vmatprep.subr.mxu0 0.0
    %90 = vmatpush1.msra.mxu0 0.0
    %91 = vmatprep.subr.mxu0 0.0
    %92 = vmatpush1.msra.mxu0 0.0
    %93 = vmatprep.subr.mxu0 0.0
    %94 = vmatpush1.msra.mxu0 0.0
    %95 = vmatprep.subr.mxu0 0.0
    %96 = vmatpush1.msra.mxu0 0.0
    %97 = vmatprep.subr.mxu0 0.0
    %98 = vmatpush1.msra.mxu0 0.0
    %99 = vmatprep.subr.mxu0 0.0
    %100 = vmatpush1.msra.mxu0 %v63
    %101 = vmatprep.subr.mxu0 0.0
    %102 = vmatpush1.msra.mxu0 %v62
    %103 = vmatprep.subr.mxu0 0.0
    %104 = vmatpush1.msra.mxu0 %v61
    %105 = vmatprep.subr.mxu0 0.0
    %106 = vmatpush1.msra.mxu0 %v60
    %107 = vmatprep.subr.mxu0 0.0
    %108 = vmatpush2.msra.mxu0 0.0
    %109 = vmatprep.subr.mxu0 0.0
    %110 = vmatpush2.msra.mxu0 0.0
    %111 = vmatprep.subr.mxu0 0.0
    %112 = vmatpush2.msra.mxu0 0.0
    %113 = vmatprep.subr.mxu0 0.0
    %114 = vmatpush2.msra.mxu0 0.0
    %115 = vmatprep.subr.mxu0 0.0
    %116 = vmatpush2.msra.mxu0 0.0
    %117 = vmatprep.subr.mxu0 0.0
    %118 = vmatpush2.msra.mxu0 0.0
    %119 = vmatprep.subr.mxu0 0.0
    %120 = vmatpush2.msra.mxu0 0.0
    %121 = vmatprep.subr.mxu0 0.0
    %122 = vmatpush2.msra.mxu0 0.0
    %123 = vmatprep.subr.mxu0 0.0
    %124 = vmatpush2.msra.mxu0 0.0
    %125 = vmatprep.subr.mxu0 0.0
    %126 = vmatpush2.msra.mxu0 0.0
    %127 = vmatprep.subr.mxu0 0.0
    %128 = vmatpush2.msra.mxu0 0.0
    %129 = vmatprep.subr.mxu0 0.0
    %130 = vmatpush2.msra.mxu0 0.0
    %131 = vmatprep.subr.mxu0 0.0
    %132 = vmatpush2.msra.mxu0 0.0
    %133 = vmatprep.subr.mxu0 0.0
    %134 = vmatpush2.msra.mxu0 0.0
    %135 = vmatprep.subr.mxu0 0.0
    %136 = vmatpush2.msra.mxu0 0.0
    %137 = vmatprep.subr.mxu0 0.0
    %138 = vmatpush2.msra.mxu0 0.0
    %139 = vmatprep.mubr.f32.mxu0 0.0
    %140 = vmatmul.mubr.f32.gmra.mxu0 %v73
    %v141 = vpop.f32.mrf.mxu0
    %v142 = vadd.f32 %v69, %v141
    %v143 = vpop.f32.mrf.mxu0
    %144 = vdwg.mxu0
    %v145 = vmul.f32 %v142, 0.01
    %v146 = vmax.f32 %v142, %v145
    %v147 = vld [vmem:[#allocation6] sm:$0xff]
    %v148 = vld [vmem:[#allocation6 + $0x8] sm:$0xff]
    %v149 = vld [vmem:[#allocation6 + $0x10] sm:$0xff]
    %v150 = vld [vmem:[#allocation6 + $0x18] sm:$0xff]
    %v151 = vld [vmem:[#allocation6 + $0x20] sm:$0xff]
    %v152 = vld [vmem:[#allocation6 + $0x28] sm:$0xff]
    %v153 = vld [vmem:[#allocation6 + $0x30] sm:$0xff]
    %v154 = vld [vmem:[#allocation6 + $0x38] sm:$0xff]
    %v155 = vld [vmem:[#allocation6 + $0x40] sm:$0xff]
    %v156 = vld [vmem:[#allocation6 + $0x48] sm:$0xff]
    %v157 = vld [vmem:[#allocation6 + $0x50] sm:$0xff]
    %v158 = vld [vmem:[#allocation6 + $0x58] sm:$0xff]
    %v159 = vld [vmem:[#allocation6 + $0x60] sm:$0xff]
    %v160 = vld [vmem:[#allocation6 + $0x68] sm:$0xff]
    %v161 = vld [vmem:[#allocation6 + $0x70] sm:$0xff]
    %v162 = vld [vmem:[#allocation6 + $0x78] sm:$0xff]
    %v163 = vld [vmem:[%s4] sm:$0x1]
    %v165 = vlaneseq
    %v166 = vshrl.u32 %v165, 7
    %v167 = vsub.s32 0, %v166
    %v168 = vrot.slane %v163, %v167
    %170 = vmatprep.subr.mxu0 0.0
    %171 = vmatpush1.msra.mxu0 %v162
    %172 = vmatprep.subr.mxu0 0.0
    %173 = vmatpush1.msra.mxu0 %v161
    %174 = vmatprep.subr.mxu0 0.0
    %175 = vmatpush1.msra.mxu0 %v160
    %176 = vmatprep.subr.mxu0 0.0
    %177 = vmatpush1.msra.mxu0 %v159
    %178 = vmatprep.subr.mxu0 0.0
    %179 = vmatpush1.msra.mxu0 %v158
    %180 = vmatprep.subr.mxu0 0.0
    %181 = vmatpush1.msra.mxu0 %v157
    %182 = vmatprep.subr.mxu0 0.0
    %183 = vmatpush1.msra.mxu0 %v156
    %184 = vmatprep.subr.mxu0 0.0
    %185 = vmatpush1.msra.mxu0 %v155
    %186 = vmatprep.subr.mxu0 0.0
    %187 = vmatpush1.msra.mxu0 %v154
    %188 = vmatprep.subr.mxu0 0.0
    %189 = vmatpush1.msra.mxu0 %v153
    %190 = vmatprep.subr.mxu0 0.0
    %191 = vmatpush1.msra.mxu0 %v152
    %192 = vmatprep.subr.mxu0 0.0
    %193 = vmatpush1.msra.mxu0 %v151
    %194 = vmatprep.subr.mxu0 0.0
    %195 = vmatpush1.msra.mxu0 %v150
    %196 = vmatprep.subr.mxu0 0.0
    %197 = vmatpush1.msra.mxu0 %v149
    %198 = vmatprep.subr.mxu0 0.0
    %199 = vmatpush1.msra.mxu0 %v148
    %200 = vmatprep.subr.mxu0 0.0
    %201 = vmatpush1.msra.mxu0 %v147
    %202 = vmatprep.subr.mxu0 0.0
    %203 = vmatpush2.msra.mxu0 0.0
    %204 = vmatprep.subr.mxu0 0.0
    %205 = vmatpush2.msra.mxu0 0.0
    %206 = vmatprep.subr.mxu0 0.0
    %207 = vmatpush2.msra.mxu0 0.0
    %208 = vmatprep.subr.mxu0 0.0
    %209 = vmatpush2.msra.mxu0 0.0
    %210 = vmatprep.subr.mxu0 0.0
    %211 = vmatpush2.msra.mxu0 0.0
    %212 = vmatprep.subr.mxu0 0.0
    %213 = vmatpush2.msra.mxu0 0.0
    %214 = vmatprep.subr.mxu0 0.0
    %215 = vmatpush2.msra.mxu0 0.0
    %216 = vmatprep.subr.mxu0 0.0
    %217 = vmatpush2.msra.mxu0 0.0
    %218 = vmatprep.subr.mxu0 0.0
    %219 = vmatpush2.msra.mxu0 0.0
    %220 = vmatprep.subr.mxu0 0.0
    %221 = vmatpush2.msra.mxu0 0.0
    %222 = vmatprep.subr.mxu0 0.0
    %223 = vmatpush2.msra.mxu0 0.0
    %224 = vmatprep.subr.mxu0 0.0
    %225 = vmatpush2.msra.mxu0 0.0
    %226 = vmatprep.subr.mxu0 0.0
    %227 = vmatpush2.msra.mxu0 0.0
    %228 = vmatprep.subr.mxu0 0.0
    %229 = vmatpush2.msra.mxu0 0.0
    %230 = vmatprep.subr.mxu0 0.0
    %231 = vmatpush2.msra.mxu0 0.0
    %232 = vmatprep.subr.mxu0 0.0
    %233 = vmatpush2.msra.mxu0 0.0
    %234 = vmatprep.mubr.f32.mxu0 0.0
    %235 = vmatmul.mubr.f32.gmra.mxu0 %v146
    %v236 = vpop.f32.mrf.mxu0
    %v237 = vadd.f32 %v168, %v236
    %v238 = vpop.f32.mrf.mxu0
    %239 = vdwg.mxu0
    %vm240 = vcmask 15360
    %241 = vst.msk [vmem:[%s5] sm:$0xff] %vm240, %v237
    // Predicated region
    $region34: #{tpu_custom_call.1} parent=1 // pred_check
      _
    $region35: #{tpu_custom_call.1} parent=1 // pred_check_branch
      %243 = sbr.rel (0) target = $region37
    $region36: #{tpu_custom_call.1} parent=1 // pred_region
      _
    $region37: #{tpu_custom_call.1} parent=1 // pred_fallthru
      _
    // Predicated region
    $region38: #{tpu_custom_call.1} parent=1 // pred_check
      _
    $region39: #{tpu_custom_call.1} parent=1 // pred_check_branch
      %245 = sbr.rel (0) target = $region41
    $region40: #{tpu_custom_call.1} parent=1 // pred_region
      _
    $region41: #{tpu_custom_call.1} parent=1 // pred_fallthru
      _
    %246 = vsyncpa [#allocation3], 1
    %247 = vsyncpa [#allocation5], 1

</llo_original>
